<compile_context>
chip_gen: v7x
topology: tpu7x:2x2x1
jax: 0.10.0
libtpu: 0.0.40
codegen_flags: <defaults>
</compile_context>

<pallas_src>
import jax
import jax.numpy as jnp
from jax import lax
from jax.experimental import pallas as pl
from jax.experimental.pallas import tpu as pltpu


def _res_gcn_kernel(f_ref, wth_ref, wpg_ref, ww_ref, sel_ref, bias_ref, out_ref):
    f32 = jnp.float32
    bf16 = jnp.bfloat16

    f = f_ref[...]                         # (D, N) f32 (leading batch dim squeezed)
    D, N = f.shape
    Np = N // 2
    Ci = wth_ref.shape[0]

    f_bf = f.astype(bf16)

    bias = bias_ref[...]                   # (R, 3) f32
    b_theta = bias[0:Ci, 0:1]              # (Ci, 1)
    b_pg = bias[0:2 * Ci, 1:2]             # (2Ci, 1)  [b_phi ; b_g]
    b_w = bias[0:D, 2:3]                   # (D, 1)    BN-folded W bias

    # --- 1x1 Conv1d projections (channel matmuls, bf16 MXU, f32 accumulate) ---
    theta = jnp.dot(wth_ref[...], f_bf, preferred_element_type=f32) + b_theta   # (Ci, N)
    pg = jnp.dot(wpg_ref[...], f_bf, preferred_element_type=f32) + b_pg         # (2Ci, N)

    # --- MaxPool1d(kernel_size=2): one selection matmul against the
    # precomputed [sel_even | sel_odd] matrix, then max of the two halves.
    # Kept in f32: exact 0/1 selection. -----------------------------------------
    sel2 = jnp.dot(pg, sel_ref[...], preferred_element_type=f32)                # (2Ci, 2*Np)
    pooled = jnp.maximum(sel2[:, :Np], sel2[:, Np:])                            # (2Ci, Np)
    phi_p = pooled[:Ci].astype(bf16)                                            # (Ci, Np)
    g_p = pooled[Ci:].astype(bf16)                                              # (Ci, Np)

    # --- A = theta^T @ phi_pooled, softmax over last dim -----------------------
    A = lax.dot_general(theta.astype(bf16), phi_p, (((0,), (0,)), ((), ())),
                        preferred_element_type=f32)                             # (N, Np)
    A = A - jnp.max(A, axis=-1, keepdims=True)
    E = jnp.exp(A)
    P = E * pl.reciprocal(jnp.sum(E, axis=-1, keepdims=True), approx=True)

    # --- lane-dense y: (Ci, N) = g_p @ P^T (contract the pooled axis) ----------
    y = lax.dot_general(g_p, P.astype(bf16), (((1,), (1,)), ((), ())),
                        preferred_element_type=f32)                             # (Ci, N)

    # --- W 1x1 conv (BatchNorm already folded on host) + residual --------------
    wy = jnp.dot(ww_ref[...], y.astype(bf16), preferred_element_type=f32) + b_w  # (D, N)
    out_ref[...] = wy + f


def res_gcn_forward(f, params):
    B, D, N = f.shape
    Ci = params["w_theta"].shape[0]
    Np = N // 2
    f32 = jnp.float32
    bf16 = jnp.bfloat16

    # TODO(synk): general D / N that are not multiples of (8, 128) (or odd N)
    # would need a padding/masking path; this kernel assumes the aligned case.
    assert N % 2 == 0 and N % 128 == 0 and D % 8 == 0

    # --- Fold inference BatchNorm1d into the W projection (host side) ----------
    eps = 1e-5
    scale = params["gamma"].astype(f32) / jnp.sqrt(params["var"].astype(f32) + eps)
    w_w_f = params["w_w"].astype(f32) * scale[:, None]                           # (D, Ci)
    b_w_f = (params["b_w"].astype(f32) - params["mean"].astype(f32)) * scale \
        + params["beta"].astype(f32)                                             # (D,)

    # --- Stack phi / g projection weights (both feed the MaxPool path) ---------
    w_pg = jnp.concatenate([params["w_phi"], params["w_g"]], axis=0).astype(f32)  # (2Ci, D)
    b_pg = jnp.concatenate([params["b_phi"], params["b_g"]], axis=0).astype(f32)  # (2Ci,)

    # --- Pack the small per-channel bias vectors into one (R, 3) operand -------
    R = max(D, 2 * Ci)
    pad_to = lambda v: jnp.pad(v.astype(f32), (0, R - v.shape[0]))
    biases = jnp.stack(
        [pad_to(params["b_theta"]), pad_to(b_pg), pad_to(b_w_f)], axis=1)         # (R, 3)

    # --- Precomputed MaxPool1d(2) selection matrix [sel_even | sel_odd] --------
    rows = jnp.arange(N)[:, None]
    cols = jnp.arange(Np)[None, :]
    sel_even = (rows == 2 * cols).astype(f32)
    sel_odd = (rows == 2 * cols + 1).astype(f32)
    sel_both = jnp.concatenate([sel_even, sel_odd], axis=1)                       # (N, 2*Np)

    args = (
        f.astype(f32),
        params["w_theta"].astype(bf16),   # (Ci, D)
        w_pg.astype(bf16),                # (2Ci, D)
        w_w_f.astype(bf16),               # (D, Ci), BN folded
        sel_both,                         # (N, 2*Np) f32
        biases,                           # (R, 3) f32
    )

    def full(shape):
        return pl.BlockSpec(shape, lambda b: (0,) * len(shape))

    in_specs = [
        pl.BlockSpec((pl.Squeezed(), D, N), lambda b: (b, 0, 0)),   # f slice
        full((Ci, D)),
        full((2 * Ci, D)),
        full((D, Ci)),
        full((N, 2 * Np)),
        full((R, 3)),
    ]

    return pl.pallas_call(
        _res_gcn_kernel,
        out_shape=jax.ShapeDtypeStruct((B, D, N), f32),
        grid_spec=pltpu.PrefetchScalarGridSpec(
            num_scalar_prefetch=0,
            grid=(B,),
            in_specs=in_specs,
            out_specs=pl.BlockSpec((pl.Squeezed(), D, N), lambda b: (b, 0, 0)),
        ),
        compiler_params=pltpu.CompilerParams(
            dimension_semantics=("parallel",)),
    )(*args)


def res_gcn_reference(f, p):
    """Pure-JAX f32 reference matching the PyTorch forward exactly."""
    def conv1x1(w, b, x):                       # (Co,Ci),(Co,),(B,Ci,N)->(B,Co,N)
        return jnp.einsum('oc,bcn->bon', w, x) + b[None, :, None]

    def maxpool2(x):                            # MaxPool1d(kernel_size=2)
        B, C, N = x.shape
        return x.reshape(B, C, N // 2, 2).max(-1)

    g = maxpool2(conv1x1(p['w_g'], p['b_g'], f))          # (B,Ci,N/2)
    theta = conv1x1(p['w_theta'], p['b_theta'], f)        # (B,Ci,N)
    phi = maxpool2(conv1x1(p['w_phi'], p['b_phi'], f))    # (B,Ci,N/2)

    A = jnp.einsum('bcn,bcm->bnm', theta, phi)            # (B,N,N/2)
    P = jax.nn.softmax(A, axis=-1)
    y = jnp.einsum('bnm,bcm->bnc', P, g)                  # (B,N,Ci)

    wy = jnp.einsum('oc,bnc->bon', p['w_w'], y) + p['b_w'][None, :, None]
    scale = p['gamma'] / jnp.sqrt(p['var'] + 1e-5)
    wy = (wy - p['mean'][None, :, None]) * scale[None, :, None] + p['beta'][None, :, None]
    return wy + f


if __name__ == "__main__":
    key = jax.random.PRNGKey(0)
    B, D, N = 2, 8, 256          # (batch, in_channels, sequence length)
    Ci = D // 2                  # inter_channels=None -> in_channels // 2

    ks = jax.random.split(key, 10)
    f = jax.random.normal(ks[0], (B, D, N), jnp.float32)

    params = dict(
        w_g=0.1 * jax.random.normal(ks[1], (Ci, D), jnp.float32),
        b_g=0.1 * jax.random.normal(ks[2], (Ci,), jnp.float32),
        w_theta=0.1 * jax.random.normal(ks[3], (Ci, D), jnp.float32),
        b_theta=0.1 * jax.random.normal(ks[4], (Ci,), jnp.float32),
        w_phi=0.1 * jax.random.normal(ks[5], (Ci, D), jnp.float32),
        b_phi=0.1 * jax.random.normal(ks[6], (Ci,), jnp.float32),
        w_w=0.1 * jax.random.normal(ks[7], (D, Ci), jnp.float32),
        b_w=0.1 * jax.random.normal(ks[8], (D,), jnp.float32),
        # BatchNorm1d: weight/bias zero-initialised in Res_GCN.__init__,
        # running stats at defaults (mean=0, var=1); inference-mode BN.
        gamma=jnp.zeros((D,), jnp.float32),
        beta=jnp.zeros((D,), jnp.float32),
        mean=jnp.zeros((D,), jnp.float32),
        var=jnp.ones((D,), jnp.float32),
    )

    # Case 1: default init (gamma=0 -> the whole non-local branch is zeroed,
    # output must equal the input exactly).
    out = jax.block_until_ready(res_gcn_forward(f, params))
    ref = res_gcn_reference(f, params)
    assert out.shape == (B, D, N)
    assert jnp.allclose(out, ref, atol=1e-3, rtol=1e-3), "mismatch vs reference"

    # Case 2: non-trivial BN affine so the attention path actually contributes.
    # Tolerance reflects the bf16 MXU operand casts (f32 accumulation).
    params2 = dict(params,
                   gamma=jnp.ones((D,), jnp.float32),
                   beta=jnp.full((D,), 0.05, jnp.float32))
    out2 = jax.block_until_ready(res_gcn_forward(f, params2))
    ref2 = res_gcn_reference(f, params2)
    assert jnp.allclose(out2, ref2, atol=1e-2, rtol=1e-2), "mismatch (gamma=1)"

    print("KERNEL_OK")
</pallas_src>

<mosaic_0001>
module attributes {stable_mosaic.version = 11 : i64} {
  func.func @_res_gcn_kernel(%arg0: i32, %arg1: memref<1x8x256xf32, #tpu.memory_space<vmem>>, %arg2: memref<4x8xbf16, #tpu.memory_space<vmem>>, %arg3: memref<8x8xbf16, #tpu.memory_space<vmem>>, %arg4: memref<8x4xbf16, #tpu.memory_space<vmem>>, %arg5: memref<256x256xf32, #tpu.memory_space<vmem>>, %arg6: memref<8x3xf32, #tpu.memory_space<vmem>>, %arg7: memref<1x8x256xf32, #tpu.memory_space<vmem>>) attributes {dimension_semantics = [#tpu.dimension_semantics<parallel>], iteration_bounds = array<i64: 2>, scalar_prefetch = 0 : i64, scratch_operands = 0 : i64, tpu.core_type = #tpu.core_type<tc>, window_params = [{transform_indices = @transform_0, window_bounds = array<i64: 1, 8, 256>}, {pipeline_mode = #tpu.pipeline_mode<synchronous>, transform_indices = @transform_1, window_bounds = array<i64: 4, 8>}, {pipeline_mode = #tpu.pipeline_mode<synchronous>, transform_indices = @transform_2, window_bounds = array<i64: 8, 8>}, {pipeline_mode = #tpu.pipeline_mode<synchronous>, transform_indices = @transform_3, window_bounds = array<i64: 8, 4>}, {pipeline_mode = #tpu.pipeline_mode<synchronous>, transform_indices = @transform_4, window_bounds = array<i64: 256, 256>}, {pipeline_mode = #tpu.pipeline_mode<synchronous>, transform_indices = @transform_5, window_bounds = array<i64: 8, 3>}, {transform_indices = @transform_6, window_bounds = array<i64: 1, 8, 256>}]} {
    %c0 = arith.constant 0 : index
    %c0_0 = arith.constant 0 : index
    %c0_1 = arith.constant 0 : index
    %0 = vector.load %arg1[%c0, %c0_0, %c0_1] : memref<1x8x256xf32, #tpu.memory_space<vmem>>, vector<1x8x256xf32>
    %1 = vector.shape_cast %0 : vector<1x8x256xf32> to vector<8x256xf32>
    %2 = arith.truncf %1 : vector<8x256xf32> to vector<8x256xbf16>
    %c0_2 = arith.constant 0 : index
    %c0_3 = arith.constant 0 : index
    %3 = vector.load %arg6[%c0_2, %c0_3] : memref<8x3xf32, #tpu.memory_space<vmem>>, vector<8x3xf32>
    %4 = vector.extract_strided_slice %3 {offsets = [0, 0], sizes = [4, 1], strides = [1, 1]} : vector<8x3xf32> to vector<4x1xf32>
    %5 = vector.extract_strided_slice %3 {offsets = [0, 1], sizes = [8, 1], strides = [1, 1]} : vector<8x3xf32> to vector<8x1xf32>
    %6 = vector.extract_strided_slice %3 {offsets = [0, 2], sizes = [8, 1], strides = [1, 1]} : vector<8x3xf32> to vector<8x1xf32>
    %c0_4 = arith.constant 0 : index
    %c0_5 = arith.constant 0 : index
    %7 = vector.load %arg2[%c0_4, %c0_5] : memref<4x8xbf16, #tpu.memory_space<vmem>>, vector<4x8xbf16>
    %cst = arith.constant dense<0.000000e+00> : vector<4x256xf32>
    %8 = tpu.matmul %7, %2, %cst {dimension_numbers = #tpu.dot_dimension_numbers<[1], [0], [0], [1], [0, 0, 1, 1], [], []>} : vector<4x8xbf16>, vector<8x256xbf16>, vector<4x256xf32> -> vector<4x256xf32>
    %9 = vector.broadcast %4 : vector<4x1xf32> to vector<4x256xf32>
    %10 = arith.addf %8, %9 : vector<4x256xf32>
    %c0_6 = arith.constant 0 : index
    %c0_7 = arith.constant 0 : index
    %11 = vector.load %arg3[%c0_6, %c0_7] : memref<8x8xbf16, #tpu.memory_space<vmem>>, vector<8x8xbf16>
    %cst_8 = arith.constant dense<0.000000e+00> : vector<8x256xf32>
    %12 = tpu.matmul %11, %2, %cst_8 {dimension_numbers = #tpu.dot_dimension_numbers<[1], [0], [0], [1], [0, 0, 1, 1], [], []>} : vector<8x8xbf16>, vector<8x256xbf16>, vector<8x256xf32> -> vector<8x256xf32>
    %13 = vector.broadcast %5 : vector<8x1xf32> to vector<8x256xf32>
    %14 = arith.addf %12, %13 : vector<8x256xf32>
    %c0_9 = arith.constant 0 : index
    %c0_10 = arith.constant 0 : index
    %15 = vector.load %arg5[%c0_9, %c0_10] : memref<256x256xf32, #tpu.memory_space<vmem>>, vector<256x256xf32>
    %cst_11 = arith.constant dense<0.000000e+00> : vector<8x256xf32>
    %16 = tpu.matmul %14, %15, %cst_11 {dimension_numbers = #tpu.dot_dimension_numbers<[1], [0], [0], [1], [0, 0, 1, 1], [], []>} : vector<8x256xf32>, vector<256x256xf32>, vector<8x256xf32> -> vector<8x256xf32>
    %17 = vector.extract_strided_slice %16 {offsets = [0, 0], sizes = [8, 128], strides = [1, 1]} : vector<8x256xf32> to vector<8x128xf32>
    %18 = vector.extract_strided_slice %16 {offsets = [0, 128], sizes = [8, 128], strides = [1, 1]} : vector<8x256xf32> to vector<8x128xf32>
    %19 = arith.maximumf %17, %18 : vector<8x128xf32>
    %20 = vector.extract_strided_slice %19 {offsets = [0, 0], sizes = [4, 128], strides = [1, 1]} : vector<8x128xf32> to vector<4x128xf32>
    %21 = arith.truncf %20 : vector<4x128xf32> to vector<4x128xbf16>
    %22 = vector.extract_strided_slice %19 {offsets = [4, 0], sizes = [4, 128], strides = [1, 1]} : vector<8x128xf32> to vector<4x128xf32>
    %23 = arith.truncf %22 : vector<4x128xf32> to vector<4x128xbf16>
    %24 = arith.truncf %10 : vector<4x256xf32> to vector<4x256xbf16>
    %cst_12 = arith.constant dense<0.000000e+00> : vector<256x128xf32>
    %25 = tpu.matmul %24, %21, %cst_12 {dimension_numbers = #tpu.dot_dimension_numbers<[0], [0], [1], [1], [0, 1, 1, 1], [], []>} : vector<4x256xbf16>, vector<4x128xbf16>, vector<256x128xf32> -> vector<256x128xf32>
    %cst_13 = arith.constant dense<0xFF800000> : vector<256xf32>
    %26 = vector.multi_reduction <maximumf>, %25, %cst_13 [1] : vector<256x128xf32> to vector<256xf32>
    %27 = vector.shape_cast %26 : vector<256xf32> to vector<256x1xf32>
    %28 = vector.broadcast %27 : vector<256x1xf32> to vector<256x128xf32>
    %29 = arith.subf %25, %28 : vector<256x128xf32>
    %30 = math.exp %29 : vector<256x128xf32>
    %cst_14 = arith.constant dense<0.000000e+00> : vector<256xf32>
    %31 = vector.multi_reduction <add>, %30, %cst_14 [1] : vector<256x128xf32> to vector<256xf32>
    %32 = vector.shape_cast %31 : vector<256xf32> to vector<256x1xf32>
    %33 = tpu.reciprocal %32 {approx = true} : vector<256x1xf32> -> vector<256x1xf32>
    %34 = vector.broadcast %33 : vector<256x1xf32> to vector<256x128xf32>
    %35 = arith.mulf %30, %34 : vector<256x128xf32>
    %36 = arith.truncf %35 : vector<256x128xf32> to vector<256x128xbf16>
    %cst_15 = arith.constant dense<0.000000e+00> : vector<4x256xf32>
    %37 = tpu.matmul %23, %36, %cst_15 {dimension_numbers = #tpu.dot_dimension_numbers<[1], [1], [0], [0], [0, 0, 1, 0], [], []>} : vector<4x128xbf16>, vector<256x128xbf16>, vector<4x256xf32> -> vector<4x256xf32>
    %c0_16 = arith.constant 0 : index
    %c0_17 = arith.constant 0 : index
    %38 = vector.load %arg4[%c0_16, %c0_17] : memref<8x4xbf16, #tpu.memory_space<vmem>>, vector<8x4xbf16>
    %39 = arith.truncf %37 : vector<4x256xf32> to vector<4x256xbf16>
    %cst_18 = arith.constant dense<0.000000e+00> : vector<8x256xf32>
    %40 = tpu.matmul %38, %39, %cst_18 {dimension_numbers = #tpu.dot_dimension_numbers<[1], [0], [0], [1], [0, 0, 1, 1], [], []>} : vector<8x4xbf16>, vector<4x256xbf16>, vector<8x256xf32> -> vector<8x256xf32>
    %41 = vector.broadcast %6 : vector<8x1xf32> to vector<8x256xf32>
    %42 = arith.addf %40, %41 : vector<8x256xf32>
    %43 = arith.addf %42, %1 : vector<8x256xf32>
    %c0_19 = arith.constant 0 : index
    %c0_20 = arith.constant 0 : index
    %c0_21 = arith.constant 0 : index
    %44 = vector.load %arg7[%c0_19, %c0_20, %c0_21] : memref<1x8x256xf32, #tpu.memory_space<vmem>>, vector<1x8x256xf32>
    %45 = vector.shape_cast %44 : vector<1x8x256xf32> to vector<8x256xf32>
    %46 = vector.shape_cast %43 : vector<8x256xf32> to vector<1x8x256xf32>
    tpu.vector_store %arg7[%c0_19, %c0_20, %c0_21], %46 {strides = array<i32>} : memref<1x8x256xf32, #tpu.memory_space<vmem>>, vector<1x8x256xf32>,
    return
  }
  func.func @transform_0(%arg0: i32) -> (i32, i32, i32) {
    %c0_i32 = arith.constant 0 : i32
    %c0_i32_0 = arith.constant 0 : i32
    %c0_i32_1 = arith.constant 0 : i32
    return %arg0, %c0_i32, %c0_i32_0 : i32, i32, i32
  }
  func.func @transform_1(%arg0: i32) -> (i32, i32) {
    %c0_i32 = arith.constant 0 : i32
    %c0_i32_0 = arith.constant 0 : i32
    %c0_i32_1 = arith.constant 0 : i32
    return %c0_i32, %c0_i32_0 : i32, i32
  }
  func.func @transform_2(%arg0: i32) -> (i32, i32) {
    %c0_i32 = arith.constant 0 : i32
    %c0_i32_0 = arith.constant 0 : i32
    %c0_i32_1 = arith.constant 0 : i32
    return %c0_i32, %c0_i32_0 : i32, i32
  }
  func.func @transform_3(%arg0: i32) -> (i32, i32) {
    %c0_i32 = arith.constant 0 : i32
    %c0_i32_0 = arith.constant 0 : i32
    %c0_i32_1 = arith.constant 0 : i32
    return %c0_i32, %c0_i32_0 : i32, i32
  }
  func.func @transform_4(%arg0: i32) -> (i32, i32) {
    %c0_i32 = arith.constant 0 : i32
    %c0_i32_0 = arith.constant 0 : i32
    %c0_i32_1 = arith.constant 0 : i32
    return %c0_i32, %c0_i32_0 : i32, i32
  }
  func.func @transform_5(%arg0: i32) -> (i32, i32) {
    %c0_i32 = arith.constant 0 : i32
    %c0_i32_0 = arith.constant 0 : i32
    %c0_i32_1 = arith.constant 0 : i32
    return %c0_i32, %c0_i32_0 : i32, i32
  }
  func.func @transform_6(%arg0: i32) -> (i32, i32, i32) {
    %c0_i32 = arith.constant 0 : i32
    %c0_i32_0 = arith.constant 0 : i32
    %c0_i32_1 = arith.constant 0 : i32
    return %arg0, %c0_i32, %c0_i32_0 : i32, i32, i32
  }
}

</mosaic_0001>

<llo_original>
// kernel: tpu_custom_call.1
$region0: #{tpu_custom_call.1}
  #allocation0 [shape = 'u32[]', space=smem, size = 0x4, offset = 0x4, fixed_abs, tag = 'smem constant byte address 0x4 - core index']
  #allocation1 [shape = 'u32[144,128]{1,0:T(1,128)}', space=vmem, size = 0x12000, scoped, tag = 'internal scratch']
  %s0 = inlined_call_operand.hbm [shape: f32[2,8,256], index: 0, kind: input, shape index: {}]
  %s1 = inlined_call_operand.vmem [shape: bf16[4,8], index: 1, kind: input, shape index: {}]
  %s2 = inlined_call_operand.vmem [shape: bf16[8,8], index: 2, kind: input, shape index: {}]
  %s3 = inlined_call_operand.vmem [shape: bf16[8,4], index: 3, kind: input, shape index: {}]
  %s4 = inlined_call_operand.hbm [shape: f32[256,256], index: 4, kind: input, shape index: {}]
  %s5 = inlined_call_operand.vmem [shape: f32[8,3], index: 5, kind: input, shape index: {}]
  %s6 = inlined_call_operand.hbm [shape: f32[2,8,256], index: 6, kind: output, shape index: {}]
  %s7 = sld [smem:[#allocation0]]
  $region65: #{tpu_custom_call.1} parent=0
    _
  %s9 = ssub.s32 1, %s7
  %s10 = scalar_select 0, %s9, %s7
  $region1: #{tpu_custom_call.1} parent=0
    #allocation2 [shape = 'u8[16384]{0}', space=vmem, size = 0x4000, scoped, tag = 'input window, operand 0']
    #allocation3 [shape = 's32[2]{0}', space=sflag, size = 0x8, scoped, tag = 'scoped memory for tpu_custom_call.1']
    #allocation4 [shape = 's32[2]{0}', space=sflag, size = 0x8, scoped, tag = 'scoped memory for tpu_custom_call.1']
    #allocation5 [shape = 'u8[262144]{0}', space=vmem, size = 0x40000, scoped, tag = 'input window, operand 4, single buffered']
    #allocation6 [shape = 's32[1]{0}', space=sflag, size = 0x4, scoped, tag = 'scoped memory for tpu_custom_call.1']
    #allocation7 [shape = 'u8[16384]{0}', space=vmem, size = 0x4000, scoped, tag = 'output window, operand 0']
    %11 = vsyncpa [#allocation3], 0
    %s12 = scalar_lea.sflag [#allocation3], 1
    %13 = vsyncpa %s12, 0
    %14 = vsyncpa [#allocation6], 0
    %15 = vsyncpa [#allocation4], 0
    %s16 = scalar_lea.sflag [#allocation4], 1
    %17 = vsyncpa %s16, 0
    loop: start=0, step=1, limit=4
    $region2: #{tpu_custom_call.1} parent=1 // loop_pre_header
      _
    $region3: #{tpu_custom_call.1} parent=1 // loop_header
      %s19 = sphi 0, %s23
      %p20 = scmp.ge.s32.totalorder %s19, 4
      %s29 = sphi 0, %s31
      %s32 = sphi 0, %s29
      %s33 = sphi 0, %s32
      %s49 = sphi 0, %s33
      %s53 = sphi 0, %s53
      %s55 = sphi 0, %s53
      %s56 = sphi 0, %s55
      %s70 = sphi 0, %s56
      %s74 = sphi 0, %s74
      %s76 = sphi 0, %s74
      %s77 = sphi 0, %s76
      %s91 = sphi 0, %s77
      %s95 = sphi 0, %s95
      %s97 = sphi 0, %s95
      %s98 = sphi 0, %s97
      %s112 = sphi 0, %s98
      %s116 = sphi 0, %s116
      %s118 = sphi 0, %s116
      %s119 = sphi 0, %s118
      %s133 = sphi 0, %s119
      %s137 = sphi 0, %s137
      %s139 = sphi 0, %s137
      %s140 = sphi 0, %s139
      %s154 = sphi 0, %s140
      %s160 = sphi 0, %s162
      %s163 = sphi 0, %s160
      %s164 = sphi 0, %s163
      %s180 = sphi 0, %s164
    $region4: #{tpu_custom_call.1} parent=1 // loop_header_branch
      %22 = sbr.rel (%p20) target = $region8
    $region5: #{tpu_custom_call.1} parent=1 // loop_body
      %s24 = ssub.s32 %s19, 1
      %s25 = ssub.s32 %s19, 2
      %s26 = sadd.s32 %s19, 1
      %s27 = ssub.s32 %s19, %s26
      %p28 = scmp.eq.s32.totalorder %s27, 0
      %s30 = sadd.s32 %s29, 1
      %s31 = scalar_select %p28, %s29, %s30
      %p34 = pneg %p28
      %p35 = scmp.eq.s32.totalorder %s19, 1
      %p36 = por %p34, %p35
      %p37 = scmp.ne.s32.totalorder %s29, %s32
      %p38 = scmp.eq.s32.totalorder %s19, 0
      %p39 = por %p37, %p38
      %p40 = scmp.ne.s32.totalorder %s29, %s32
      %p41 = scmp.eq.s32.totalorder %s24, 1
      %p42 = por %p40, %p41
      %p43 = scmp.ne.s32.totalorder %s32, %s33
      %p44 = scmp.eq.s32.totalorder %s24, 0
      %p45 = por %p43, %p44
      %p46 = scmp.ne.s32.totalorder %s32, %s33
      %p47 = scmp.eq.s32.totalorder %s25, 1
      %p48 = por %p46, %p47
      %p50 = scmp.ne.s32.totalorder %s33, %s49
      %p51 = scmp.eq.s32.totalorder %s25, 0
      %p52 = por %p50, %p51
      %s54 = sadd.s32 %s53, 1
      %p57 = scmp.eq.s32.totalorder %s19, 1
      %p58 = scmp.ne.s32.totalorder %s53, %s55
      %p59 = scmp.eq.s32.totalorder %s19, 0
      %p60 = por %p58, %p59
      %p61 = scmp.ne.s32.totalorder %s53, %s55
      %p62 = scmp.eq.s32.totalorder %s24, 1
      %p63 = por %p61, %p62
      %p64 = scmp.ne.s32.totalorder %s55, %s56
      %p65 = scmp.eq.s32.totalorder %s24, 0
      %p66 = por %p64, %p65
      %p67 = scmp.ne.s32.totalorder %s55, %s56
      %p68 = scmp.eq.s32.totalorder %s25, 1
      %p69 = por %p67, %p68
      %p71 = scmp.ne.s32.totalorder %s56, %s70
      %p72 = scmp.eq.s32.totalorder %s25, 0
      %p73 = por %p71, %p72
      %s75 = sadd.s32 %s74, 1
      %p78 = scmp.eq.s32.totalorder %s19, 1
      %p79 = scmp.ne.s32.totalorder %s74, %s76
      %p80 = scmp.eq.s32.totalorder %s19, 0
      %p81 = por %p79, %p80
      %p82 = scmp.ne.s32.totalorder %s74, %s76
      %p83 = scmp.eq.s32.totalorder %s24, 1
      %p84 = por %p82, %p83
      %p85 = scmp.ne.s32.totalorder %s76, %s77
      %p86 = scmp.eq.s32.totalorder %s24, 0
      %p87 = por %p85, %p86
      %p88 = scmp.ne.s32.totalorder %s76, %s77
      %p89 = scmp.eq.s32.totalorder %s25, 1
      %p90 = por %p88, %p89
      %p92 = scmp.ne.s32.totalorder %s77, %s91
      %p93 = scmp.eq.s32.totalorder %s25, 0
      %p94 = por %p92, %p93
      %s96 = sadd.s32 %s95, 1
      %p99 = scmp.eq.s32.totalorder %s19, 1
      %p100 = scmp.ne.s32.totalorder %s95, %s97
      %p101 = scmp.eq.s32.totalorder %s19, 0
      %p102 = por %p100, %p101
      %p103 = scmp.ne.s32.totalorder %s95, %s97
      %p104 = scmp.eq.s32.totalorder %s24, 1
      %p105 = por %p103, %p104
      %p106 = scmp.ne.s32.totalorder %s97, %s98
      %p107 = scmp.eq.s32.totalorder %s24, 0
      %p108 = por %p106, %p107
      %p109 = scmp.ne.s32.totalorder %s97, %s98
      %p110 = scmp.eq.s32.totalorder %s25, 1
      %p111 = por %p109, %p110
      %p113 = scmp.ne.s32.totalorder %s98, %s112
      %p114 = scmp.eq.s32.totalorder %s25, 0
      %p115 = por %p113, %p114
      %s117 = sadd.s32 %s116, 1
      %p120 = scmp.eq.s32.totalorder %s19, 1
      %p121 = scmp.ne.s32.totalorder %s116, %s118
      %p122 = scmp.eq.s32.totalorder %s19, 0
      %p123 = por %p121, %p122
      %p124 = scmp.ne.s32.totalorder %s116, %s118
      %p125 = scmp.eq.s32.totalorder %s24, 1
      %p126 = por %p124, %p125
      %p127 = scmp.ne.s32.totalorder %s118, %s119
      %p128 = scmp.eq.s32.totalorder %s24, 0
      %p129 = por %p127, %p128
      %p130 = scmp.ne.s32.totalorder %s118, %s119
      %p131 = scmp.eq.s32.totalorder %s25, 1
      %p132 = por %p130, %p131
      %p134 = scmp.ne.s32.totalorder %s119, %s133
      %p135 = scmp.eq.s32.totalorder %s25, 0
      %p136 = por %p134, %p135
      %s138 = sadd.s32 %s137, 1
      %p141 = scmp.eq.s32.totalorder %s19, 1
      %p142 = scmp.ne.s32.totalorder %s137, %s139
      %p143 = scmp.eq.s32.totalorder %s19, 0
      %p144 = por %p142, %p143
      %p145 = scmp.ne.s32.totalorder %s137, %s139
      %p146 = scmp.eq.s32.totalorder %s24, 1
      %p147 = por %p145, %p146
      %p148 = scmp.ne.s32.totalorder %s139, %s140
      %p149 = scmp.eq.s32.totalorder %s24, 0
      %p150 = por %p148, %p149
      %p151 = scmp.ne.s32.totalorder %s139, %s140
      %p152 = scmp.eq.s32.totalorder %s25, 1
      %p153 = por %p151, %p152
      %p155 = scmp.ne.s32.totalorder %s140, %s154
      %p156 = scmp.eq.s32.totalorder %s25, 0
      %p157 = por %p155, %p156
      %s158 = ssub.s32 %s19, %s26
      %p159 = scmp.eq.s32.totalorder %s158, 0
      %s161 = sadd.s32 %s160, 1
      %s162 = scalar_select %p159, %s160, %s161
      %p165 = pneg %p159
      %p166 = scmp.eq.s32.totalorder %s19, 1
      %p167 = por %p165, %p166
      %p168 = scmp.ne.s32.totalorder %s160, %s163
      %p169 = scmp.eq.s32.totalorder %s19, 0
      %p170 = por %p168, %p169
      %p171 = scmp.ne.s32.totalorder %s160, %s163
      %p172 = scmp.eq.s32.totalorder %s24, 1
      %p173 = por %p171, %p172
      %p174 = scmp.ne.s32.totalorder %s163, %s164
      %p175 = scmp.eq.s32.totalorder %s24, 0
      %p176 = por %p174, %p175
      %p177 = scmp.ne.s32.totalorder %s163, %s164
      %p178 = scmp.eq.s32.totalorder %s25, 1
      %p179 = por %p177, %p178
      %p181 = scmp.ne.s32.totalorder %s164, %s180
      %p182 = scmp.eq.s32.totalorder %s25, 0
      %p183 = por %p181, %p182
      %p184 = scmp.le.s32.totalorder 1, %s19
      %p185 = scmp.lt.s32.totalorder %s19, 3
      %p186 = pnand %p184, %p185
      %p187 = pneg %p186
      // Predicated region
      $region9: #{tpu_custom_call.1} parent=5 // pred_check
        _
      $region10: #{tpu_custom_call.1} parent=5 // pred_check_branch
        %189 = sbr.rel (%p186) target = $region12
      $region11: #{tpu_custom_call.1} parent=5 // pred_region
        %s190 = ssub.s32 %s19, 1
        // Predicated region
        $region13: #{tpu_custom_call.1} parent=11 // pred_check
          %p191 = pneg %p66
        $region14: #{tpu_custom_call.1} parent=11 // pred_check_branch
          %193 = sbr.rel (%p191) target = $region16
        $region15: #{tpu_custom_call.1} parent=11 // pred_region
          _
        $region16: #{tpu_custom_call.1} parent=11 // pred_fallthru
          _
        // Predicated region
        $region17: #{tpu_custom_call.1} parent=11 // pred_check
          %p194 = pneg %p87
        $region18: #{tpu_custom_call.1} parent=11 // pred_check_branch
          %196 = sbr.rel (%p194) target = $region20
        $region19: #{tpu_custom_call.1} parent=11 // pred_region
          _
        $region20: #{tpu_custom_call.1} parent=11 // pred_fallthru
          _
        // Predicated region
        $region21: #{tpu_custom_call.1} parent=11 // pred_check
          %p197 = pneg %p108
        $region22: #{tpu_custom_call.1} parent=11 // pred_check_branch
          %199 = sbr.rel (%p197) target = $region24
        $region23: #{tpu_custom_call.1} parent=11 // pred_region
          _
        $region24: #{tpu_custom_call.1} parent=11 // pred_fallthru
          _
        // Predicated region
        $region25: #{tpu_custom_call.1} parent=11 // pred_check
          %p200 = pneg %p129
        $region26: #{tpu_custom_call.1} parent=11 // pred_check_branch
          %202 = sbr.rel (%p200) target = $region28
        $region27: #{tpu_custom_call.1} parent=11 // pred_region
          %s204 = ssub.s32 8192, 8192
          %205 = vsyncadd [#allocation6], %s204
          %s206 = sshll.u32 [#allocation5], 4
          %s207 = int_to_ptr.vmem [resolvable:$true] %s206
          %212 = dma.hbm_to_vmem [thread:$0]  %s4, 8192, %s207, [#allocation6], 256, 256, 16
        $region28: #{tpu_custom_call.1} parent=11 // pred_fallthru
          _
        // Predicated region
        $region29: #{tpu_custom_call.1} parent=11 // pred_check
          %p213 = pneg %p150
        $region30: #{tpu_custom_call.1} parent=11 // pred_check_branch
          %215 = sbr.rel (%p213) target = $region32
        $region31: #{tpu_custom_call.1} parent=11 // pred_region
          _
        $region32: #{tpu_custom_call.1} parent=11 // pred_fallthru
          _
      $region12: #{tpu_custom_call.1} parent=5 // pred_fallthru
        _
      %p216 = scmp.lt.s32.totalorder %s19, 2
      // Predicated region
      $region33: #{tpu_custom_call.1} parent=5 // pred_check
        %p217 = pneg %p216
      $region34: #{tpu_custom_call.1} parent=5 // pred_check_branch
        %219 = sbr.rel (%p217) target = $region36
      $region35: #{tpu_custom_call.1} parent=5 // pred_region
        // Predicated region
        $region37: #{tpu_custom_call.1} parent=35 // pred_check
          %p220 = pneg %p39
        $region38: #{tpu_custom_call.1} parent=35 // pred_check_branch
          %222 = sbr.rel (%p220) target = $region40
        $region39: #{tpu_custom_call.1} parent=35 // pred_region
          %s223 = sand.u32 %s29, 1
          %s224 = scalar_lea.sflag [#allocation3], %s223
          %s225 = sand.u32 %s29, 1
          %s226 = smul.addr %s225, 16
          %s227 = scalar_lea.vmem [#allocation2], %s226
          %s229 = ssub.s32 256, 256
          %230 = vsyncadd %s224, %s229
          %s231 = smul.addr %s19, 2
          %s232 = smul.addr %s231, 128
          %s233 = scalar_lea.hbm %s0, %s232
          %s235 = sshll.u32 %s227, 4
          %s236 = int_to_ptr.vmem [resolvable:$true] %s235
          %238 = dma.hbm_to_vmem [thread:$0]  %s233, 256, %s236, %s224
        $region40: #{tpu_custom_call.1} parent=35 // pred_fallthru
          _
      $region36: #{tpu_custom_call.1} parent=5 // pred_fallthru
        _
      %p239 = scmp.le.s32.totalorder 1, %s19
      %p240 = scmp.lt.s32.totalorder %s19, 3
      %p241 = pnand %p239, %p240
      %p242 = pneg %p241
      // Predicated region
      $region41: #{tpu_custom_call.1} parent=5 // pred_check
        _
      $region42: #{tpu_custom_call.1} parent=5 // pred_check_branch
        %244 = sbr.rel (%p241) target = $region44
      $region43: #{tpu_custom_call.1} parent=5 // pred_region
        %s245 = ssub.s32 %s19, 1
        %s246 = sand.u32 %s32, 1
        %s247 = scalar_lea.sflag [#allocation3], %s246
        %s248 = sand.u32 %s32, 1
        %s249 = smul.addr %s248, 16
        %s250 = scalar_lea.vmem [#allocation2], %s249
        // Predicated region
        $region45: #{tpu_custom_call.1} parent=43 // pred_check
          %p251 = pneg %p45
        $region46: #{tpu_custom_call.1} parent=43 // pred_check_branch
          %253 = sbr.rel (%p251) target = $region48
        $region47: #{tpu_custom_call.1} parent=43 // pred_region
          %254 = dma.done %s247, 256
        $region48: #{tpu_custom_call.1} parent=43 // pred_fallthru
          _
        // Predicated region
        $region49: #{tpu_custom_call.1} parent=43 // pred_check
          %p255 = pneg %p129
        $region50: #{tpu_custom_call.1} parent=43 // pred_check_branch
          %257 = sbr.rel (%p255) target = $region52
        $region51: #{tpu_custom_call.1} parent=43 // pred_region
          %258 = dma.done [#allocation6], 8192
        $region52: #{tpu_custom_call.1} parent=43 // pred_fallthru
          _
        %s259 = sand.u32 %s32, 1
        %s260 = scalar_lea.sflag [#allocation3], %s259
        %s261 = sand.u32 %s32, 1
        %s262 = smul.addr %s261, 16
        %s263 = scalar_lea.vmem [#allocation2], %s262
        %p264 = pneg %p45
        %p265 = pneg %p42
        %p266 = pneg %p66
        %p267 = pneg %p63
        %p268 = pneg %p87
        %p269 = pneg %p84
        %p270 = pneg %p108
        %p271 = pneg %p105
        %p272 = pneg %p129
        %p273 = pneg %p126
        %p274 = pneg %p150
        %p275 = pneg %p147
        %p276 = pneg %p176
        %p277 = pneg %p173
        %s278 = sand.u32 %s163, 1
        %s279 = scalar_lea.sflag [#allocation4], %s278
        %s280 = sand.u32 %s163, 1
        %s281 = smul.addr %s280, 16
        %s282 = scalar_lea.vmem [#allocation7], %s281
        %v284 = vld [vmem:[%s250] sm:$0xff]
        %v285 = vld [vmem:[%s250 + $0x8] sm:$0xff]
        %v286 = vpack.c.bf16 %v284, %v284
        %v287 = vpack.c.bf16 %v285, %v285
        %v288 = vld [vmem:[%s5] sm:$0xff]
        %v289 = vld [vmem:[%s1] sm:$0x3]
        %291 = vset.pattern.permute.xlu0 0
        %292 = vperm.xlu0 %291, %v288
        %v293 = vpop.permute.xlu0 %292
        %vm295 = vcmask 64512
        %v297 = vsel %vm295, %v289, 0
        %vm299 = vcmask 1043456
        %v301 = vsel %vm299, %v286, 0
        %v304 = vsel %vm299, %v287, 0
        %306 = vmatprep.subr.bf16.mxu0 %v304
        %307 = vmatpush1.bf16.msra.mxu0 %v301
        %308 = vmatprep.subr.bf16.mxu0 0
        %309 = vmatpush1.bf16.msra.mxu0 0
        %310 = vmatprep.subr.bf16.mxu0 0
        %311 = vmatpush1.bf16.msra.mxu0 0
        %312 = vmatprep.subr.bf16.mxu0 0
        %313 = vmatpush1.bf16.msra.mxu0 0
        %314 = vmatprep.subr.bf16.mxu0 0
        %315 = vmatpush1.bf16.msra.mxu0 0
        %316 = vmatprep.subr.bf16.mxu0 0
        %317 = vmatpush1.bf16.msra.mxu0 0
        %318 = vmatprep.subr.bf16.mxu0 0
        %319 = vmatpush1.bf16.msra.mxu0 0
        %320 = vmatprep.subr.bf16.mxu0 0
        %321 = vmatpush1.bf16.msra.mxu0 0
        %322 = vmatprep.subr.bf16.mxu0 0
        %323 = vmatpush1.bf16.msra.mxu0 0
        %324 = vmatprep.subr.bf16.mxu0 0
        %325 = vmatpush1.bf16.msra.mxu0 0
        %326 = vmatprep.subr.bf16.mxu0 0
        %327 = vmatpush1.bf16.msra.mxu0 0
        %328 = vmatprep.subr.bf16.mxu0 0
        %329 = vmatpush1.bf16.msra.mxu0 0
        %330 = vmatprep.subr.bf16.mxu0 0
        %331 = vmatpush1.bf16.msra.mxu0 0
        %332 = vmatprep.subr.bf16.mxu0 0
        %333 = vmatpush1.bf16.msra.mxu0 0
        %334 = vmatprep.subr.bf16.mxu0 0
        %335 = vmatpush1.bf16.msra.mxu0 0
        %336 = vmatprep.subr.bf16.mxu0 0
        %337 = vmatpush1.bf16.msra.mxu0 0
        %338 = vmatprep.mubr.bf16.mxu0 0
        %339 = vmatmul.mubr.bf16.gmra.mrb[0].mxu0 %v297
        %v340 = vpop.f32.mrb[0].mxu0
        %v341 = vadd.f32 %v293, %v340
        %v342 = vpop.f32.mrb[0].mxu0
        %v343 = vadd.f32 %v293, %v342
        %v344 = vpop.f32.mrb[0].mxu0
        %v345 = vpop.f32.mrb[0].mxu0
        %346 = vdwg.mxu0
        %v347 = vld [vmem:[%s2] sm:$0xf]
        %348 = vset.pattern.permute.xlu0 1
        %349 = vperm.xlu0 %348, %v288
        %v350 = vpop.permute.xlu0 %349
        %v353 = vsel %vm295, %v347, 0
        %355 = vmatprep.subr.bf16.mxu0 %v304
        %356 = vmatpush1.bf16.msra.mxu0 %v301
        %357 = vmatprep.subr.bf16.mxu0 0
        %358 = vmatpush1.bf16.msra.mxu0 0
        %359 = vmatprep.subr.bf16.mxu0 0
        %360 = vmatpush1.bf16.msra.mxu0 0
        %361 = vmatprep.subr.bf16.mxu0 0
        %362 = vmatpush1.bf16.msra.mxu0 0
        %363 = vmatprep.subr.bf16.mxu0 0
        %364 = vmatpush1.bf16.msra.mxu0 0
        %365 = vmatprep.subr.bf16.mxu0 0
        %366 = vmatpush1.bf16.msra.mxu0 0
        %367 = vmatprep.subr.bf16.mxu0 0
        %368 = vmatpush1.bf16.msra.mxu0 0
        %369 = vmatprep.subr.bf16.mxu0 0
        %370 = vmatpush1.bf16.msra.mxu0 0
        %371 = vmatprep.subr.bf16.mxu0 0
        %372 = vmatpush1.bf16.msra.mxu0 0
        %373 = vmatprep.subr.bf16.mxu0 0
        %374 = vmatpush1.bf16.msra.mxu0 0
        %375 = vmatprep.subr.bf16.mxu0 0
        %376 = vmatpush1.bf16.msra.mxu0 0
        %377 = vmatprep.subr.bf16.mxu0 0
        %378 = vmatpush1.bf16.msra.mxu0 0
        %379 = vmatprep.subr.bf16.mxu0 0
        %380 = vmatpush1.bf16.msra.mxu0 0
        %381 = vmatprep.subr.bf16.mxu0 0
        %382 = vmatpush1.bf16.msra.mxu0 0
        %383 = vmatprep.subr.bf16.mxu0 0
        %384 = vmatpush1.bf16.msra.mxu0 0
        %385 = vmatprep.subr.bf16.mxu0 0
        %386 = vmatpush1.bf16.msra.mxu0 0
        %387 = vmatprep.mubr.bf16.mxu0 0
        %388 = vmatmul.mubr.bf16.gmra.mrb[0].mxu0 %v353
        %v389 = vpop.f32.mrb[0].mxu0
        %v390 = vadd.f32 %v350, %v389
        %v391 = vpop.f32.mrb[0].mxu0
        %v392 = vadd.f32 %v350, %v391
        %v393 = vpop.f32.mrb[0].mxu0
        %v394 = vpop.f32.mrb[0].mxu0
        %395 = vdwg.mxu0
        %v396 = vld [vmem:[#allocation5] sm:$0xff]
        %v397 = vld [vmem:[#allocation5 + $0x8] sm:$0xff]
        %v398 = vld [vmem:[#allocation5 + $0x10] sm:$0xff]
        %v399 = vld [vmem:[#allocation5 + $0x18] sm:$0xff]
        %v400 = vld [vmem:[#allocation5 + $0x20] sm:$0xff]
        %v401 = vld [vmem:[#allocation5 + $0x28] sm:$0xff]
        %v402 = vld [vmem:[#allocation5 + $0x30] sm:$0xff]
        %v403 = vld [vmem:[#allocation5 + $0x38] sm:$0xff]
        %v404 = vld [vmem:[#allocation5 + $0x40] sm:$0xff]
        %v405 = vld [vmem:[#allocation5 + $0x48] sm:$0xff]
        %v406 = vld [vmem:[#allocation5 + $0x50] sm:$0xff]
        %v407 = vld [vmem:[#allocation5 + $0x58] sm:$0xff]
        %v408 = vld [vmem:[#allocation5 + $0x60] sm:$0xff]
        %v409 = vld [vmem:[#allocation5 + $0x68] sm:$0xff]
        %v410 = vld [vmem:[#allocation5 + $0x70] sm:$0xff]
        %v411 = vld [vmem:[#allocation5 + $0x78] sm:$0xff]
        %v412 = vld [vmem:[#allocation5 + $0x80] sm:$0xff]
        %v413 = vld [vmem:[#allocation5 + $0x88] sm:$0xff]
        %v414 = vld [vmem:[#allocation5 + $0x90] sm:$0xff]
        %v415 = vld [vmem:[#allocation5 + $0x98] sm:$0xff]
        %v416 = vld [vmem:[#allocation5 + $0xa0] sm:$0xff]
        %v417 = vld [vmem:[#allocation5 + $0xa8] sm:$0xff]
        %v418 = vld [vmem:[#allocation5 + $0xb0] sm:$0xff]
        %v419 = vld [vmem:[#allocation5 + $0xb8] sm:$0xff]
        %v420 = vld [vmem:[#allocation5 + $0xc0] sm:$0xff]
        %v421 = vld [vmem:[#allocation5 + $0xc8] sm:$0xff]
        %v422 = vld [vmem:[#allocation5 + $0xd0] sm:$0xff]
        %v423 = vld [vmem:[#allocation5 + $0xd8] sm:$0xff]
        %v424 = vld [vmem:[#allocation5 + $0xe0] sm:$0xff]
        %v425 = vld [vmem:[#allocation5 + $0xe8] sm:$0xff]
        %v426 = vld [vmem:[#allocation5 + $0xf0] sm:$0xff]
        %v427 = vld [vmem:[#allocation5 + $0xf8] sm:$0xff]
        %v428 = vld [vmem:[#allocation5 + $0x100] sm:$0xff]
        %v429 = vld [vmem:[#allocation5 + $0x108] sm:$0xff]
        %v430 = vld [vmem:[#allocation5 + $0x110] sm:$0xff]
        %v431 = vld [vmem:[#allocation5 + $0x118] sm:$0xff]
        %v432 = vld [vmem:[#allocation5 + $0x120] sm:$0xff]
        %v433 = vld [vmem:[#allocation5 + $0x128] sm:$0xff]
        %v434 = vld [vmem:[#allocation5 + $0x130] sm:$0xff]
        %v435 = vld [vmem:[#allocation5 + $0x138] sm:$0xff]
        %v436 = vld [vmem:[#allocation5 + $0x140] sm:$0xff]
        %v437 = vld [vmem:[#allocation5 + $0x148] sm:$0xff]
        %v438 = vld [vmem:[#allocation5 + $0x150] sm:$0xff]
        %v439 = vld [vmem:[#allocation5 + $0x158] sm:$0xff]
        %v440 = vld [vmem:[#allocation5 + $0x160] sm:$0xff]
        %v441 = vld [vmem:[#allocation5 + $0x168] sm:$0xff]
        %v442 = vld [vmem:[#allocation5 + $0x170] sm:$0xff]
        %v443 = vld [vmem:[#allocation5 + $0x178] sm:$0xff]
        %v444 = vld [vmem:[#allocation5 + $0x180] sm:$0xff]
        %v445 = vld [vmem:[#allocation5 + $0x188] sm:$0xff]
        %v446 = vld [vmem:[#allocation5 + $0x190] sm:$0xff]
        %v447 = vld [vmem:[#allocation5 + $0x198] sm:$0xff]
        %v448 = vld [vmem:[#allocation5 + $0x1a0] sm:$0xff]
        %v449 = vld [vmem:[#allocation5 + $0x1a8] sm:$0xff]
        %v450 = vld [vmem:[#allocation5 + $0x1b0] sm:$0xff]
        %v451 = vld [vmem:[#allocation5 + $0x1b8] sm:$0xff]
        %v452 = vld [vmem:[#allocation5 + $0x1c0] sm:$0xff]
        %v453 = vld [vmem:[#allocation5 + $0x1c8] sm:$0xff]
        %v454 = vld [vmem:[#allocation5 + $0x1d0] sm:$0xff]
        %v455 = vld [vmem:[#allocation5 + $0x1d8] sm:$0xff]
        %v456 = vld [vmem:[#allocation5 + $0x1e0] sm:$0xff]
        %v457 = vld [vmem:[#allocation5 + $0x1e8] sm:$0xff]
        %v458 = vld [vmem:[#allocation5 + $0x1f0] sm:$0xff]
        %v459 = vld [vmem:[#allocation5 + $0x1f8] sm:$0xff]
        %460 = vmatprep.subr.mxu0 %v397
        %461 = vmatpush1.msra.mxu0 %v396
        %462 = vmatprep.subr.mxu0 %v399
        %463 = vmatpush1.msra.mxu0 %v398
        %464 = vmatprep.subr.mxu0 %v401
        %465 = vmatpush1.msra.mxu0 %v400
        %466 = vmatprep.subr.mxu0 %v403
        %467 = vmatpush1.msra.mxu0 %v402
        %468 = vmatprep.subr.mxu0 %v405
        %469 = vmatpush1.msra.mxu0 %v404
        %470 = vmatprep.subr.mxu0 %v407
        %471 = vmatpush1.msra.mxu0 %v406
        %472 = vmatprep.subr.mxu0 %v409
        %473 = vmatpush1.msra.mxu0 %v408
        %474 = vmatprep.subr.mxu0 %v411
        %475 = vmatpush1.msra.mxu0 %v410
        %476 = vmatprep.subr.mxu0 %v413
        %477 = vmatpush1.msra.mxu0 %v412
        %478 = vmatprep.subr.mxu0 %v415
        %479 = vmatpush1.msra.mxu0 %v414
        %480 = vmatprep.subr.mxu0 %v417
        %481 = vmatpush1.msra.mxu0 %v416
        %482 = vmatprep.subr.mxu0 %v419
        %483 = vmatpush1.msra.mxu0 %v418
        %484 = vmatprep.subr.mxu0 %v421
        %485 = vmatpush1.msra.mxu0 %v420
        %486 = vmatprep.subr.mxu0 %v423
        %487 = vmatpush1.msra.mxu0 %v422
        %488 = vmatprep.subr.mxu0 %v425
        %489 = vmatpush1.msra.mxu0 %v424
        %490 = vmatprep.subr.mxu0 %v427
        %491 = vmatpush1.msra.mxu0 %v426
        %492 = vmatprep.subr.mxu0 %v429
        %493 = vmatpush1.msra.mxu0 %v428
        %494 = vmatprep.subr.mxu0 %v431
        %495 = vmatpush1.msra.mxu0 %v430
        %496 = vmatprep.subr.mxu0 %v433
        %497 = vmatpush1.msra.mxu0 %v432
        %498 = vmatprep.subr.mxu0 %v435
        %499 = vmatpush1.msra.mxu0 %v434
        %500 = vmatprep.subr.mxu0 %v437
        %501 = vmatpush1.msra.mxu0 %v436
        %502 = vmatprep.subr.mxu0 %v439
        %503 = vmatpush1.msra.mxu0 %v438
        %504 = vmatprep.subr.mxu0 %v441
        %505 = vmatpush1.msra.mxu0 %v440
        %506 = vmatprep.subr.mxu0 %v443
        %507 = vmatpush1.msra.mxu0 %v442
        %508 = vmatprep.subr.mxu0 %v445
        %509 = vmatpush1.msra.mxu0 %v444
        %510 = vmatprep.subr.mxu0 %v447
        %511 = vmatpush1.msra.mxu0 %v446
        %512 = vmatprep.subr.mxu0 %v449
        %513 = vmatpush1.msra.mxu0 %v448
        %514 = vmatprep.subr.mxu0 %v451
        %515 = vmatpush1.msra.mxu0 %v450
        %516 = vmatprep.subr.mxu0 %v453
        %517 = vmatpush1.msra.mxu0 %v452
        %518 = vmatprep.subr.mxu0 %v455
        %519 = vmatpush1.msra.mxu0 %v454
        %520 = vmatprep.subr.mxu0 %v457
        %521 = vmatpush1.msra.mxu0 %v456
        %522 = vmatprep.subr.mxu0 %v459
        %523 = vmatpush1.msra.mxu0 %v458
        %524 = vmatprep.mubr.f32.mxu0 %v392
        %525 = vmatmul.mubr.f32.gmra.mrb[0].mxu0 %v390
        %v526 = vpop.f32.mrb[0].mxu0
        %v527 = vadd.f32 0.0, %v526
        %v528 = vpop.f32.mrb[0].mxu0
        %v529 = vadd.f32 0.0, %v528
        %530 = vdwg.mxu0
        %v531 = vmax.f32 %v527, %v529
        %v532 = vpack.c.bf16 %v531, %v531
        %v533 = vpack.c.bf16 %v341, %v341
        %v534 = vpack.c.bf16 %v343, %v343
        %535 = vxpose.xlu0.c.b16.start [1/8] %v533, 128
        %536 = vxpose.xlu0.c.b16.cont [2/8] 0, 128
        %537 = vxpose.xlu0.c.b16.cont [3/8] 0, 128
        %538 = vxpose.xlu0.c.b16.cont [4/8] 0, 128
        %539 = vxpose.xlu0.c.b16.cont [5/8] 0, 128
        %540 = vxpose.xlu0.c.b16.cont [6/8] 0, 128
        %541 = vxpose.xlu0.c.b16.cont [7/8] 0, 128
        %542 = vxpose.xlu0.c.b16.end [8/8] 0, 128
        %v543 = vpop.trf.xlu0
        %v544 = vpop.trf.xlu0
        %v545 = vpop.trf.xlu0
        %v546 = vpop.trf.xlu0
        %v547 = vpop.trf.xlu0
        %v548 = vpop.trf.xlu0
        %v549 = vpop.trf.xlu0
        %v550 = vpop.trf.xlu0
        %551 = vxpose.xlu0.c.b16.start [1/8] %v534, 128
        %552 = vxpose.xlu0.c.b16.cont [2/8] 0, 128
        %553 = vxpose.xlu0.c.b16.cont [3/8] 0, 128
        %554 = vxpose.xlu0.c.b16.cont [4/8] 0, 128
        %555 = vxpose.xlu0.c.b16.cont [5/8] 0, 128
        %556 = vxpose.xlu0.c.b16.cont [6/8] 0, 128
        %557 = vxpose.xlu0.c.b16.cont [7/8] 0, 128
        %558 = vxpose.xlu0.c.b16.end [8/8] 0, 128
        %v559 = vpop.trf.xlu0
        %v560 = vpop.trf.xlu0
        %v561 = vpop.trf.xlu0
        %v562 = vpop.trf.xlu0
        %v563 = vpop.trf.xlu0
        %v564 = vpop.trf.xlu0
        %v565 = vpop.trf.xlu0
        %v566 = vpop.trf.xlu0
        %vm567 = vcmask 31744
        %v569 = vsel %vm567, %v543, 0
        %v572 = vsel %vm567, %v544, 0
        %v575 = vsel %vm567, %v545, 0
        %v578 = vsel %vm567, %v546, 0
        %v581 = vsel %vm567, %v547, 0
        %v584 = vsel %vm567, %v548, 0
        %v587 = vsel %vm567, %v549, 0
        %v590 = vsel %vm567, %v550, 0
        %v593 = vsel %vm567, %v559, 0
        %v596 = vsel %vm567, %v560, 0
        %v599 = vsel %vm567, %v561, 0
        %v602 = vsel %vm567, %v562, 0
        %v605 = vsel %vm567, %v563, 0
        %v608 = vsel %vm567, %v564, 0
        %v611 = vsel %vm567, %v565, 0
        %v614 = vsel %vm567, %v566, 0
        %vm616 = vcmask 1041408
        %v618 = vsel %vm616, %v532, 0
        %620 = vmatprep.subr.bf16.mxu0 0
        %621 = vmatpush1.bf16.msra.mxu0 %v618
        %622 = vmatprep.subr.bf16.mxu0 0
        %623 = vmatpush1.bf16.msra.mxu0 0
        %624 = vmatprep.subr.bf16.mxu0 0
        %625 = vmatpush1.bf16.msra.mxu0 0
        %626 = vmatprep.subr.bf16.mxu0 0
        %627 = vmatpush1.bf16.msra.mxu0 0
        %628 = vmatprep.subr.bf16.mxu0 0
        %629 = vmatpush1.bf16.msra.mxu0 0
        %630 = vmatprep.subr.bf16.mxu0 0
        %631 = vmatpush1.bf16.msra.mxu0 0
        %632 = vmatprep.subr.bf16.mxu0 0
        %633 = vmatpush1.bf16.msra.mxu0 0
        %634 = vmatprep.subr.bf16.mxu0 0
        %635 = vmatpush1.bf16.msra.mxu0 0
        %636 = vmatprep.subr.bf16.mxu0 0
        %637 = vmatpush1.bf16.msra.mxu0 0
        %638 = vmatprep.subr.bf16.mxu0 0
        %639 = vmatpush1.bf16.msra.mxu0 0
        %640 = vmatprep.subr.bf16.mxu0 0
        %641 = vmatpush1.bf16.msra.mxu0 0
        %642 = vmatprep.subr.bf16.mxu0 0
        %643 = vmatpush1.bf16.msra.mxu0 0
        %644 = vmatprep.subr.bf16.mxu0 0
        %645 = vmatpush1.bf16.msra.mxu0 0
        %646 = vmatprep.subr.bf16.mxu0 0
        %647 = vmatpush1.bf16.msra.mxu0 0
        %648 = vmatprep.subr.bf16.mxu0 0
        %649 = vmatpush1.bf16.msra.mxu0 0
        %650 = vmatprep.subr.bf16.mxu0 0
        %651 = vmatpush1.bf16.msra.mxu0 0
        %652 = vmatprep.mubr.bf16.mxu0 0
        %653 = vmatmul.mubr.bf16.gmra.mrb[0].mxu0 %v569
        %v654 = vpop.f32.mrb[0].mxu0
        %v655 = vadd.f32 0.0, %v654
        %v656 = vpop.f32.mrb[0].mxu0
        %v657 = vpop.f32.mrb[0].mxu0
        %v658 = vadd.f32 0.0, %v657
        %v659 = vpop.f32.mrb[0].mxu0
        %660 = vmatprep.mubr.bf16.mxu0 0
        %661 = vmatmul.mubr.bf16.gmra.mrb[0].mxu0 %v572
        %v662 = vpop.f32.mrb[0].mxu0
        %v663 = vadd.f32 0.0, %v662
        %v664 = vpop.f32.mrb[0].mxu0
        %v665 = vpop.f32.mrb[0].mxu0
        %v666 = vadd.f32 0.0, %v665
        %v667 = vpop.f32.mrb[0].mxu0
        %668 = vmatprep.mubr.bf16.mxu0 0
        %669 = vmatmul.mubr.bf16.gmra.mrb[0].mxu0 %v575
        %v670 = vpop.f32.mrb[0].mxu0
        %v671 = vadd.f32 0.0, %v670
        %v672 = vpop.f32.mrb[0].mxu0
        %v673 = vpop.f32.mrb[0].mxu0
        %v674 = vadd.f32 0.0, %v673
        %v675 = vpop.f32.mrb[0].mxu0
        %676 = vmatprep.mubr.bf16.mxu0 0
        %677 = vmatmul.mubr.bf16.gmra.mrb[0].mxu0 %v578
        %v678 = vpop.f32.mrb[0].mxu0
        %v679 = vadd.f32 0.0, %v678
        %v680 = vpop.f32.mrb[0].mxu0
        %v681 = vpop.f32.mrb[0].mxu0
        %v682 = vadd.f32 0.0, %v681
        %v683 = vpop.f32.mrb[0].mxu0
        %684 = vmatprep.mubr.bf16.mxu0 0
        %685 = vmatmul.mubr.bf16.gmra.mrb[0].mxu0 %v581
        %v686 = vpop.f32.mrb[0].mxu0
        %v687 = vadd.f32 0.0, %v686
        %v688 = vpop.f32.mrb[0].mxu0
        %v689 = vpop.f32.mrb[0].mxu0
        %v690 = vadd.f32 0.0, %v689
        %v691 = vpop.f32.mrb[0].mxu0
        %692 = vmatprep.mubr.bf16.mxu0 0
        %693 = vmatmul.mubr.bf16.gmra.mrb[0].mxu0 %v584
        %v694 = vpop.f32.mrb[0].mxu0
        %v695 = vadd.f32 0.0, %v694
        %v696 = vpop.f32.mrb[0].mxu0
        %v697 = vpop.f32.mrb[0].mxu0
        %v698 = vadd.f32 0.0, %v697
        %v699 = vpop.f32.mrb[0].mxu0
        %700 = vmatprep.mubr.bf16.mxu0 0
        %701 = vmatmul.mubr.bf16.gmra.mrb[0].mxu0 %v587
        %v702 = vpop.f32.mrb[0].mxu0
        %v703 = vadd.f32 0.0, %v702
        %v704 = vpop.f32.mrb[0].mxu0
        %v705 = vpop.f32.mrb[0].mxu0
        %v706 = vadd.f32 0.0, %v705
        %v707 = vpop.f32.mrb[0].mxu0
        %708 = vmatprep.mubr.bf16.mxu0 0
        %709 = vmatmul.mubr.bf16.gmra.mrb[0].mxu0 %v590
        %v710 = vpop.f32.mrb[0].mxu0
        %v711 = vadd.f32 0.0, %v710
        %v712 = vpop.f32.mrb[0].mxu0
        %v713 = vpop.f32.mrb[0].mxu0
        %v714 = vadd.f32 0.0, %v713
        %v715 = vpop.f32.mrb[0].mxu0
        %716 = vmatprep.mubr.bf16.mxu0 0
        %717 = vmatmul.mubr.bf16.gmra.mrb[0].mxu0 %v593
        %v718 = vpop.f32.mrb[0].mxu0
        %v719 = vadd.f32 0.0, %v718
        %v720 = vpop.f32.mrb[0].mxu0
        %v721 = vpop.f32.mrb[0].mxu0
        %v722 = vadd.f32 0.0, %v721
        %v723 = vpop.f32.mrb[0].mxu0
        %724 = vmatprep.mubr.bf16.mxu0 0
        %725 = vmatmul.mubr.bf16.gmra.mrb[0].mxu0 %v596
        %v726 = vpop.f32.mrb[0].mxu0
        %v727 = vadd.f32 0.0, %v726
        %v728 = vpop.f32.mrb[0].mxu0
        %v729 = vpop.f32.mrb[0].mxu0
        %v730 = vadd.f32 0.0, %v729
        %v731 = vpop.f32.mrb[0].mxu0
        %732 = vmatprep.mubr.bf16.mxu0 0
        %733 = vmatmul.mubr.bf16.gmra.mrb[0].mxu0 %v599
        %v734 = vpop.f32.mrb[0].mxu0
        %v735 = vadd.f32 0.0, %v734
        %v736 = vpop.f32.mrb[0].mxu0
        %v737 = vpop.f32.mrb[0].mxu0
        %v738 = vadd.f32 0.0, %v737
        %v739 = vpop.f32.mrb[0].mxu0
        %740 = vmatprep.mubr.bf16.mxu0 0
        %741 = vmatmul.mubr.bf16.gmra.mrb[0].mxu0 %v602
        %v742 = vpop.f32.mrb[0].mxu0
        %v743 = vadd.f32 0.0, %v742
        %v744 = vpop.f32.mrb[0].mxu0
        %v745 = vpop.f32.mrb[0].mxu0
        %v746 = vadd.f32 0.0, %v745
        %v747 = vpop.f32.mrb[0].mxu0
        %748 = vmatprep.mubr.bf16.mxu0 0
        %749 = vmatmul.mubr.bf16.gmra.mrb[0].mxu0 %v605
        %v750 = vpop.f32.mrb[0].mxu0
        %v751 = vadd.f32 0.0, %v750
        %v752 = vpop.f32.mrb[0].mxu0
        %v753 = vpop.f32.mrb[0].mxu0
        %v754 = vadd.f32 0.0, %v753
        %v755 = vpop.f32.mrb[0].mxu0
        %756 = vmatprep.mubr.bf16.mxu0 0
        %757 = vmatmul.mubr.bf16.gmra.mrb[0].mxu0 %v608
        %v758 = vpop.f32.mrb[0].mxu0
        %v759 = vadd.f32 0.0, %v758
        %v760 = vpop.f32.mrb[0].mxu0
        %v761 = vpop.f32.mrb[0].mxu0
        %v762 = vadd.f32 0.0, %v761
        %v763 = vpop.f32.mrb[0].mxu0
        %764 = vmatprep.mubr.bf16.mxu0 0
        %765 = vmatmul.mubr.bf16.gmra.mrb[0].mxu0 %v611
        %v766 = vpop.f32.mrb[0].mxu0
        %v767 = vadd.f32 0.0, %v766
        %v768 = vpop.f32.mrb[0].mxu0
        %v769 = vpop.f32.mrb[0].mxu0
        %v770 = vadd.f32 0.0, %v769
        %v771 = vpop.f32.mrb[0].mxu0
        %772 = vmatprep.mubr.bf16.mxu0 0
        %773 = vmatmul.mubr.bf16.gmra.mrb[0].mxu0 %v614
        %v774 = vpop.f32.mrb[0].mxu0
        %v775 = vadd.f32 0.0, %v774
        %v776 = vpop.f32.mrb[0].mxu0
        %v777 = vpop.f32.mrb[0].mxu0
        %v778 = vadd.f32 0.0, %v777
        %v779 = vpop.f32.mrb[0].mxu0
        %780 = vdwg.mxu0
        %781 = vmax.xlane.f32.xlu0 %v655
        %v782 = vpop.xlane.xlu0 %781
        %783 = vmax.xlane.f32.xlu0 %v658
        %v784 = vpop.xlane.xlu0 %783
        %785 = vmax.xlane.f32.xlu0 %v663
        %v786 = vpop.xlane.xlu0 %785
        %787 = vmax.xlane.f32.xlu0 %v666
        %v788 = vpop.xlane.xlu0 %787
        %789 = vmax.xlane.f32.xlu0 %v671
        %v790 = vpop.xlane.xlu0 %789
        %791 = vmax.xlane.f32.xlu0 %v674
        %v792 = vpop.xlane.xlu0 %791
        %793 = vmax.xlane.f32.xlu0 %v679
        %v794 = vpop.xlane.xlu0 %793
        %795 = vmax.xlane.f32.xlu0 %v682
        %v796 = vpop.xlane.xlu0 %795
        %797 = vmax.xlane.f32.xlu0 %v687
        %v798 = vpop.xlane.xlu0 %797
        %799 = vmax.xlane.f32.xlu0 %v690
        %v800 = vpop.xlane.xlu0 %799
        %801 = vmax.xlane.f32.xlu0 %v695
        %v802 = vpop.xlane.xlu0 %801
        %803 = vmax.xlane.f32.xlu0 %v698
        %v804 = vpop.xlane.xlu0 %803
        %805 = vmax.xlane.f32.xlu0 %v703
        %v806 = vpop.xlane.xlu0 %805
        %807 = vmax.xlane.f32.xlu0 %v706
        %v808 = vpop.xlane.xlu0 %807
        %809 = vmax.xlane.f32.xlu0 %v711
        %v810 = vpop.xlane.xlu0 %809
        %811 = vmax.xlane.f32.xlu0 %v714
        %v812 = vpop.xlane.xlu0 %811
        %813 = vmax.xlane.f32.xlu0 %v719
        %v814 = vpop.xlane.xlu0 %813
        %815 = vmax.xlane.f32.xlu0 %v722
        %v816 = vpop.xlane.xlu0 %815
        %817 = vmax.xlane.f32.xlu0 %v727
        %v818 = vpop.xlane.xlu0 %817
        %819 = vmax.xlane.f32.xlu0 %v730
        %v820 = vpop.xlane.xlu0 %819
        %821 = vmax.xlane.f32.xlu0 %v735
        %v822 = vpop.xlane.xlu0 %821
        %823 = vmax.xlane.f32.xlu0 %v738
        %v824 = vpop.xlane.xlu0 %823
        %825 = vmax.xlane.f32.xlu0 %v743
        %v826 = vpop.xlane.xlu0 %825
        %827 = vmax.xlane.f32.xlu0 %v746
        %v828 = vpop.xlane.xlu0 %827
        %829 = vmax.xlane.f32.xlu0 %v751
        %v830 = vpop.xlane.xlu0 %829
        %831 = vmax.xlane.f32.xlu0 %v754
        %v832 = vpop.xlane.xlu0 %831
        %833 = vmax.xlane.f32.xlu0 %v759
        %v834 = vpop.xlane.xlu0 %833
        %835 = vmax.xlane.f32.xlu0 %v762
        %v836 = vpop.xlane.xlu0 %835
        %837 = vmax.xlane.f32.xlu0 %v767
        %v838 = vpop.xlane.xlu0 %837
        %839 = vmax.xlane.f32.xlu0 %v770
        %v840 = vpop.xlane.xlu0 %839
        %841 = vmax.xlane.f32.xlu0 %v775
        %v842 = vpop.xlane.xlu0 %841
        %843 = vmax.xlane.f32.xlu0 %v778
        %v844 = vpop.xlane.xlu0 %843
        %v845 = vsub.f32 %v655, %v782
        %v846 = vsub.f32 %v658, %v784
        %v847 = vsub.f32 %v663, %v786
        %v848 = vsub.f32 %v666, %v788
        %v849 = vsub.f32 %v671, %v790
        %v850 = vsub.f32 %v674, %v792
        %v851 = vsub.f32 %v679, %v794
        %v852 = vsub.f32 %v682, %v796
        %v853 = vsub.f32 %v687, %v798
        %v854 = vsub.f32 %v690, %v800
        %v855 = vsub.f32 %v695, %v802
        %v856 = vsub.f32 %v698, %v804
        %v857 = vsub.f32 %v703, %v806
        %v858 = vsub.f32 %v706, %v808
        %v859 = vsub.f32 %v711, %v810
        %v860 = vsub.f32 %v714, %v812
        %v861 = vsub.f32 %v719, %v814
        %v862 = vsub.f32 %v722, %v816
        %v863 = vsub.f32 %v727, %v818
        %v864 = vsub.f32 %v730, %v820
        %v865 = vsub.f32 %v735, %v822
        %v866 = vsub.f32 %v738, %v824
        %v867 = vsub.f32 %v743, %v826
        %v868 = vsub.f32 %v746, %v828
        %v869 = vsub.f32 %v751, %v830
        %v870 = vsub.f32 %v754, %v832
        %v871 = vsub.f32 %v759, %v834
        %v872 = vsub.f32 %v762, %v836
        %v873 = vsub.f32 %v767, %v838
        %v874 = vsub.f32 %v770, %v840
        %v875 = vsub.f32 %v775, %v842
        %v876 = vsub.f32 %v778, %v844
        %v877 = vmul.f32 %v845, 1.442695
        %v878 = vpow.pop %v877
        %v879 = vmul.f32 %v846, 1.442695
        %v880 = vpow.pop %v879
        %v881 = vmul.f32 %v847, 1.442695
        %v882 = vpow.pop %v881
        %v883 = vmul.f32 %v848, 1.442695
        %v884 = vpow.pop %v883
        %v885 = vmul.f32 %v849, 1.442695
        %v886 = vpow.pop %v885
        %v887 = vmul.f32 %v850, 1.442695
        %v888 = vpow.pop %v887
        %v889 = vmul.f32 %v851, 1.442695
        %v890 = vpow.pop %v889
        %v891 = vmul.f32 %v852, 1.442695
        %v892 = vpow.pop %v891
        %v893 = vmul.f32 %v853, 1.442695
        %v894 = vpow.pop %v893
        %v895 = vmul.f32 %v854, 1.442695
        %v896 = vpow.pop %v895
        %v897 = vmul.f32 %v855, 1.442695
        %v898 = vpow.pop %v897
        %v899 = vmul.f32 %v856, 1.442695
        %v900 = vpow.pop %v899
        %v901 = vmul.f32 %v857, 1.442695
        %v902 = vpow.pop %v901
        %v903 = vmul.f32 %v858, 1.442695
        %v904 = vpow.pop %v903
        %v905 = vmul.f32 %v859, 1.442695
        %v906 = vpow.pop %v905
        %v907 = vmul.f32 %v860, 1.442695
        %v908 = vpow.pop %v907
        %v909 = vmul.f32 %v861, 1.442695
        %v910 = vpow.pop %v909
        %v911 = vmul.f32 %v862, 1.442695
        %v912 = vpow.pop %v911
        %v913 = vmul.f32 %v863, 1.442695
        %v914 = vpow.pop %v913
        %v915 = vmul.f32 %v864, 1.442695
        %v916 = vpow.pop %v915
        %v917 = vmul.f32 %v865, 1.442695
        %v918 = vpow.pop %v917
        %v919 = vmul.f32 %v866, 1.442695
        %v920 = vpow.pop %v919
        %v921 = vmul.f32 %v867, 1.442695
        %v922 = vpow.pop %v921
        %v923 = vmul.f32 %v868, 1.442695
        %v924 = vpow.pop %v923
        %v925 = vmul.f32 %v869, 1.442695
        %v926 = vpow.pop %v925
        %v927 = vmul.f32 %v870, 1.442695
        %v928 = vpow.pop %v927
        %v929 = vmul.f32 %v871, 1.442695
        %v930 = vpow.pop %v929
        %v931 = vmul.f32 %v872, 1.442695
        %v932 = vpow.pop %v931
        %v933 = vmul.f32 %v873, 1.442695
        %v934 = vpow.pop %v933
        %v935 = vmul.f32 %v874, 1.442695
        %v936 = vpow.pop %v935
        %v937 = vmul.f32 %v875, 1.442695
        %v938 = vpow.pop %v937
        %v939 = vmul.f32 %v876, 1.442695
        %v940 = vpow.pop %v939
        %941 = vadd.xlane.f32.xlu0 %v878
        %v942 = vpop.xlane.xlu0 %941
        %943 = vadd.xlane.f32.xlu0 %v880
        %v944 = vpop.xlane.xlu0 %943
        %945 = vadd.xlane.f32.xlu0 %v882
        %v946 = vpop.xlane.xlu0 %945
        %947 = vadd.xlane.f32.xlu0 %v884
        %v948 = vpop.xlane.xlu0 %947
        %949 = vadd.xlane.f32.xlu0 %v886
        %v950 = vpop.xlane.xlu0 %949
        %951 = vadd.xlane.f32.xlu0 %v888
        %v952 = vpop.xlane.xlu0 %951
        %953 = vadd.xlane.f32.xlu0 %v890
        %v954 = vpop.xlane.xlu0 %953
        %955 = vadd.xlane.f32.xlu0 %v892
        %v956 = vpop.xlane.xlu0 %955
        %957 = vadd.xlane.f32.xlu0 %v894
        %v958 = vpop.xlane.xlu0 %957
        %959 = vadd.xlane.f32.xlu0 %v896
        %v960 = vpop.xlane.xlu0 %959
        %961 = vadd.xlane.f32.xlu0 %v898
        %v962 = vpop.xlane.xlu0 %961
        %963 = vadd.xlane.f32.xlu0 %v900
        %v964 = vpop.xlane.xlu0 %963
        %965 = vadd.xlane.f32.xlu0 %v902
        %v966 = vpop.xlane.xlu0 %965
        %967 = vadd.xlane.f32.xlu0 %v904
        %v968 = vpop.xlane.xlu0 %967
        %969 = vadd.xlane.f32.xlu0 %v906
        %v970 = vpop.xlane.xlu0 %969
        %971 = vadd.xlane.f32.xlu0 %v908
        %v972 = vpop.xlane.xlu0 %971
        %973 = vadd.xlane.f32.xlu0 %v910
        %v974 = vpop.xlane.xlu0 %973
        %975 = vadd.xlane.f32.xlu0 %v912
        %v976 = vpop.xlane.xlu0 %975
        %977 = vadd.xlane.f32.xlu0 %v914
        %v978 = vpop.xlane.xlu0 %977
        %979 = vadd.xlane.f32.xlu0 %v916
        %v980 = vpop.xlane.xlu0 %979
        %981 = vadd.xlane.f32.xlu0 %v918
        %v982 = vpop.xlane.xlu0 %981
        %983 = vadd.xlane.f32.xlu0 %v920
        %v984 = vpop.xlane.xlu0 %983
        %985 = vadd.xlane.f32.xlu0 %v922
        %v986 = vpop.xlane.xlu0 %985
        %987 = vadd.xlane.f32.xlu0 %v924
        %v988 = vpop.xlane.xlu0 %987
        %989 = vadd.xlane.f32.xlu0 %v926
        %v990 = vpop.xlane.xlu0 %989
        %991 = vadd.xlane.f32.xlu0 %v928
        %v992 = vpop.xlane.xlu0 %991
        %993 = vadd.xlane.f32.xlu0 %v930
        %v994 = vpop.xlane.xlu0 %993
        %995 = vadd.xlane.f32.xlu0 %v932
        %v996 = vpop.xlane.xlu0 %995
        %997 = vadd.xlane.f32.xlu0 %v934
        %v998 = vpop.xlane.xlu0 %997
        %999 = vadd.xlane.f32.xlu0 %v936
        %v1000 = vpop.xlane.xlu0 %999
        %1001 = vadd.xlane.f32.xlu0 %v938
        %v1002 = vpop.xlane.xlu0 %1001
        %1003 = vadd.xlane.f32.xlu0 %v940
        %v1004 = vpop.xlane.xlu0 %1003
        %v1005 = vrcp.pop %v942
        %v1006 = vrcp.pop %v944
        %v1007 = vrcp.pop %v946
        %v1008 = vrcp.pop %v948
        %v1009 = vrcp.pop %v950
        %v1010 = vrcp.pop %v952
        %v1011 = vrcp.pop %v954
        %v1012 = vrcp.pop %v956
        %v1013 = vrcp.pop %v958
        %v1014 = vrcp.pop %v960
        %v1015 = vrcp.pop %v962
        %v1016 = vrcp.pop %v964
        %v1017 = vrcp.pop %v966
        %v1018 = vrcp.pop %v968
        %v1019 = vrcp.pop %v970
        %v1020 = vrcp.pop %v972
        %v1021 = vrcp.pop %v974
        %v1022 = vrcp.pop %v976
        %v1023 = vrcp.pop %v978
        %v1024 = vrcp.pop %v980
        %v1025 = vrcp.pop %v982
        %v1026 = vrcp.pop %v984
        %v1027 = vrcp.pop %v986
        %v1028 = vrcp.pop %v988
        %v1029 = vrcp.pop %v990
        %v1030 = vrcp.pop %v992
        %v1031 = vrcp.pop %v994
        %v1032 = vrcp.pop %v996
        %v1033 = vrcp.pop %v998
        %v1034 = vrcp.pop %v1000
        %v1035 = vrcp.pop %v1002
        %v1036 = vrcp.pop %v1004
        %v1037 = vmul.f32 %v878, %v1005
        %v1038 = vmul.f32 %v880, %v1006
        %v1039 = vmul.f32 %v882, %v1007
        %v1040 = vmul.f32 %v884, %v1008
        %v1041 = vmul.f32 %v886, %v1009
        %v1042 = vmul.f32 %v888, %v1010
        %v1043 = vmul.f32 %v890, %v1011
        %v1044 = vmul.f32 %v892, %v1012
        %v1045 = vmul.f32 %v894, %v1013
        %v1046 = vmul.f32 %v896, %v1014
        %v1047 = vmul.f32 %v898, %v1015
        %v1048 = vmul.f32 %v900, %v1016
        %v1049 = vmul.f32 %v902, %v1017
        %v1050 = vmul.f32 %v904, %v1018
        %v1051 = vmul.f32 %v906, %v1019
        %v1052 = vmul.f32 %v908, %v1020
        %v1053 = vmul.f32 %v910, %v1021
        %v1054 = vmul.f32 %v912, %v1022
        %v1055 = vmul.f32 %v914, %v1023
        %v1056 = vmul.f32 %v916, %v1024
        %v1057 = vmul.f32 %v918, %v1025
        %v1058 = vmul.f32 %v920, %v1026
        %v1059 = vmul.f32 %v922, %v1027
        %v1060 = vmul.f32 %v924, %v1028
        %v1061 = vmul.f32 %v926, %v1029
        %v1062 = vmul.f32 %v928, %v1030
        %v1063 = vmul.f32 %v930, %v1031
        %v1064 = vmul.f32 %v932, %v1032
        %v1065 = vmul.f32 %v934, %v1033
        %v1066 = vmul.f32 %v936, %v1034
        %v1067 = vmul.f32 %v938, %v1035
        %v1068 = vmul.f32 %v940, %v1036
        %v1069 = vpack.c.bf16 %v1038, %v1037
        %v1070 = vpack.c.bf16 %v1040, %v1039
        %v1071 = vpack.c.bf16 %v1042, %v1041
        %v1072 = vpack.c.bf16 %v1044, %v1043
        %v1073 = vpack.c.bf16 %v1046, %v1045
        %v1074 = vpack.c.bf16 %v1048, %v1047
        %v1075 = vpack.c.bf16 %v1050, %v1049
        %v1076 = vpack.c.bf16 %v1052, %v1051
        %v1077 = vpack.c.bf16 %v1054, %v1053
        %v1078 = vpack.c.bf16 %v1056, %v1055
        %v1079 = vpack.c.bf16 %v1058, %v1057
        %v1080 = vpack.c.bf16 %v1060, %v1059
        %v1081 = vpack.c.bf16 %v1062, %v1061
        %v1082 = vpack.c.bf16 %v1064, %v1063
        %v1083 = vpack.c.bf16 %v1066, %v1065
        %v1084 = vpack.c.bf16 %v1068, %v1067
        %v1086 = vrot.slane %v532, 2
        %1088 = vmatprep.subr.bf16.mxu0 0
        %1089 = vmatpush1.bf16.xpose.msra.mxu0 %v1069
        %1090 = vmatprep.subr.bf16.mxu0 0
        %1091 = vmatpush1.bf16.xpose.msra.mxu0 %v1070
        %1092 = vmatprep.subr.bf16.mxu0 0
        %1093 = vmatpush1.bf16.xpose.msra.mxu0 %v1071
        %1094 = vmatprep.subr.bf16.mxu0 0
        %1095 = vmatpush1.bf16.xpose.msra.mxu0 %v1072
        %1096 = vmatprep.subr.bf16.mxu0 0
        %1097 = vmatpush1.bf16.xpose.msra.mxu0 %v1073
        %1098 = vmatprep.subr.bf16.mxu0 0
        %1099 = vmatpush1.bf16.xpose.msra.mxu0 %v1074
        %1100 = vmatprep.subr.bf16.mxu0 0
        %1101 = vmatpush1.bf16.xpose.msra.mxu0 %v1075
        %1102 = vmatprep.subr.bf16.mxu0 0
        %1103 = vmatpush1.bf16.xpose.msra.mxu0 %v1076
        %1104 = vmatprep.subr.bf16.mxu0 0
        %1105 = vmatpush1.bf16.xpose.msra.mxu0 %v1077
        %1106 = vmatprep.subr.bf16.mxu0 0
        %1107 = vmatpush1.bf16.xpose.msra.mxu0 %v1078
        %1108 = vmatprep.subr.bf16.mxu0 0
        %1109 = vmatpush1.bf16.xpose.msra.mxu0 %v1079
        %1110 = vmatprep.subr.bf16.mxu0 0
        %1111 = vmatpush1.bf16.xpose.msra.mxu0 %v1080
        %1112 = vmatprep.subr.bf16.mxu0 0
        %1113 = vmatpush1.bf16.xpose.msra.mxu0 %v1081
        %1114 = vmatprep.subr.bf16.mxu0 0
        %1115 = vmatpush1.bf16.xpose.msra.mxu0 %v1082
        %1116 = vmatprep.subr.bf16.mxu0 0
        %1117 = vmatpush1.bf16.xpose.msra.mxu0 %v1083
        %1118 = vmatprep.subr.bf16.mxu0 0
        %1119 = vmatpush1.bf16.xpose.msra.mxu0 %v1084
        %1120 = vmatprep.mubr.bf16.mxu0 0
        %1121 = vmatmul.mubr.bf16.gmra.mrb[0].mxu0 %v1086
        %v1122 = vpop.f32.mrb[0].mxu0
        %v1123 = vadd.f32 0.0, %v1122
        %v1124 = vpop.f32.mrb[0].mxu0
        %v1125 = vadd.f32 0.0, %v1124
        %v1126 = vpop.f32.mrb[0].mxu0
        %v1127 = vpop.f32.mrb[0].mxu0
        %1128 = vdwg.mxu0
        %v1129 = vld [vmem:[%s3] sm:$0xf]
        %v1130 = vpack.c.bf16 %v1123, %v1123
        %v1131 = vpack.c.bf16 %v1125, %v1125
        %1132 = vset.pattern.permute.xlu0 2
        %1133 = vperm.xlu0 %1132, %v288
        %v1134 = vpop.permute.xlu0 %1133
        %v1137 = vsel %vm567, %v1129, 0
        %v1140 = vsel %vm616, %v1130, 0
        %v1143 = vsel %vm616, %v1131, 0
        %1145 = vmatprep.subr.bf16.mxu0 %v1143
        %1146 = vmatpush1.bf16.msra.mxu0 %v1140
        %1147 = vmatprep.subr.bf16.mxu0 0
        %1148 = vmatpush1.bf16.msra.mxu0 0
        %1149 = vmatprep.subr.bf16.mxu0 0
        %1150 = vmatpush1.bf16.msra.mxu0 0
        %1151 = vmatprep.subr.bf16.mxu0 0
        %1152 = vmatpush1.bf16.msra.mxu0 0
        %1153 = vmatprep.subr.bf16.mxu0 0
        %1154 = vmatpush1.bf16.msra.mxu0 0
        %1155 = vmatprep.subr.bf16.mxu0 0
        %1156 = vmatpush1.bf16.msra.mxu0 0
        %1157 = vmatprep.subr.bf16.mxu0 0
        %1158 = vmatpush1.bf16.msra.mxu0 0
        %1159 = vmatprep.subr.bf16.mxu0 0
        %1160 = vmatpush1.bf16.msra.mxu0 0
        %1161 = vmatprep.subr.bf16.mxu0 0
        %1162 = vmatpush1.bf16.msra.mxu0 0
        %1163 = vmatprep.subr.bf16.mxu0 0
        %1164 = vmatpush1.bf16.msra.mxu0 0
        %1165 = vmatprep.subr.bf16.mxu0 0
        %1166 = vmatpush1.bf16.msra.mxu0 0
        %1167 = vmatprep.subr.bf16.mxu0 0
        %1168 = vmatpush1.bf16.msra.mxu0 0
        %1169 = vmatprep.subr.bf16.mxu0 0
        %1170 = vmatpush1.bf16.msra.mxu0 0
        %1171 = vmatprep.subr.bf16.mxu0 0
        %1172 = vmatpush1.bf16.msra.mxu0 0
        %1173 = vmatprep.subr.bf16.mxu0 0
        %1174 = vmatpush1.bf16.msra.mxu0 0
        %1175 = vmatprep.subr.bf16.mxu0 0
        %1176 = vmatpush1.bf16.msra.mxu0 0
        %1177 = vmatprep.mubr.bf16.mxu0 0
        %1178 = vmatmul.mubr.bf16.gmra.mrb[0].mxu0 %v1137
        %v1179 = vpop.f32.mrb[0].mxu0
        %v1180 = vadd.f32 %v1134, %v1179
        %v1181 = vpop.f32.mrb[0].mxu0
        %v1182 = vadd.f32 %v1134, %v1181
        %v1183 = vpop.f32.mrb[0].mxu0
        %v1184 = vpop.f32.mrb[0].mxu0
        %1185 = vdwg.mxu0
        %v1186 = vadd.f32 %v1180, %v284
        %v1187 = vadd.f32 %v1182, %v285
        %1188 = vst [vmem:[%s282] sm:$0xff] %v1186
        %1189 = vst [vmem:[%s282 + $0x8] sm:$0xff] %v1187
        %s1190 = sand.u32 %s163, 1
        %s1191 = scalar_lea.sflag [#allocation4], %s1190
        %s1192 = sand.u32 %s163, 1
        %s1193 = smul.addr %s1192, 16
        %s1194 = scalar_lea.vmem [#allocation7], %s1193
        // Predicated region
        $region53: #{tpu_custom_call.1} parent=43 // pred_check
          %p1195 = pneg %p173
        $region54: #{tpu_custom_call.1} parent=43 // pred_check_branch
          %1197 = sbr.rel (%p1195) target = $region56
        $region55: #{tpu_custom_call.1} parent=43 // pred_region
          %s1199 = ssub.s32 256, 256
          %1200 = vsyncadd %s1191, %s1199
          %s1201 = smul.addr %s24, 2
          %s1202 = smul.addr %s1201, 128
          %s1203 = scalar_lea.hbm %s6, %s1202
          %s1205 = sshll.u32 %s1194, 4
          %s1206 = int_to_ptr.vmem [resolvable:$true] %s1205
          %1208 = dma.vmem_to_hbm [thread:$0]  %s1206, 256, %s1203, %s1191
        $region56: #{tpu_custom_call.1} parent=43 // pred_fallthru
          _
      $region44: #{tpu_custom_call.1} parent=5 // pred_fallthru
        _
      %p1209 = scmp.le.s32.totalorder 2, %s19
      // Predicated region
      $region57: #{tpu_custom_call.1} parent=5 // pred_check
        %p1210 = pneg %p1209
      $region58: #{tpu_custom_call.1} parent=5 // pred_check_branch
        %1212 = sbr.rel (%p1210) target = $region60
      $region59: #{tpu_custom_call.1} parent=5 // pred_region
        %s1213 = ssub.s32 %s19, 2
        // Predicated region
        $region61: #{tpu_custom_call.1} parent=59 // pred_check
          %p1214 = pneg %p179
        $region62: #{tpu_custom_call.1} parent=59 // pred_check_branch
          %1216 = sbr.rel (%p1214) target = $region64
        $region63: #{tpu_custom_call.1} parent=59 // pred_region
          %s1217 = sand.u32 %s164, 1
          %s1218 = scalar_lea.sflag [#allocation4], %s1217
          %s1219 = sand.u32 %s164, 1
          %s1220 = smul.addr %s1219, 16
          %s1221 = scalar_lea.vmem [#allocation7], %s1220
          %1222 = dma.done %s1218, 256
        $region64: #{tpu_custom_call.1} parent=59 // pred_fallthru
          _
      $region60: #{tpu_custom_call.1} parent=5 // pred_fallthru
        _
    $region6: #{tpu_custom_call.1} parent=1 // loop_footer
      %s23 = sadd.s32 1, %s19
    $region7: #{tpu_custom_call.1} parent=1 // loop_footer_branch
      %18 = sbr.rel target = $region3
    $region8: #{tpu_custom_call.1} parent=1 // loop_exit
      _
    %1223 = vsyncpa [#allocation3], 1
    %s1224 = scalar_lea.sflag [#allocation3], 1
    %1225 = vsyncpa %s1224, 1
    %1226 = vsyncpa [#allocation6], 1
    %1227 = vsyncpa [#allocation4], 1
    %s1228 = scalar_lea.sflag [#allocation4], 1
    %1229 = vsyncpa %s1228, 1

</llo_original>
